<compile_context>
chip_gen: v6e
topology: v6e:2x2x1
jax: 0.10.0
libtpu: 0.0.40
codegen_flags: <defaults>
</compile_context>

<pallas_src>
import functools

import jax
import jax.numpy as jnp
from jax.experimental import pallas as pl
from jax.experimental.pallas import tpu as pltpu


def _device_kind() -> str:
    try:
        return jax.devices()[0].device_kind.lower()
    except Exception:
        return ""


def _layernorm_kernel(x_ref, gamma_ref, beta_ref, o_ref, *, eps, bf16_epilogue):
    # x_ref: (row_tile, hidden); gamma_ref / beta_ref: (1, hidden)
    x = x_ref[...]
    xf = x.astype(jnp.float32)

    # Single-pass stats: the two row reductions are independent (overlap on the
    # XLU); biased variance via E[x^2] - E[x]^2, clamped, f32 accumulation.
    u = jnp.mean(xf, axis=-1, keepdims=True)
    ex2 = jnp.mean(xf * xf, axis=-1, keepdims=True)
    var = jnp.maximum(ex2 - u * u, 0.0)
    inv = jax.lax.rsqrt(var + eps)              # eps inside the sqrt (TF/BERT)

    if bf16_epilogue:
        # bf16 VALU epilogue (v6e/v7x only; stats stay f32) halves elementwise
        # vreg traffic for bf16 tensors.
        cd = jnp.bfloat16
        scale = inv.astype(cd) * gamma_ref[...].astype(cd)
        out = (x.astype(cd) - u.astype(cd)) * scale + beta_ref[...].astype(cd)
    else:
        scale = inv * gamma_ref[...].astype(jnp.float32)
        out = (xf - u) * scale + beta_ref[...].astype(jnp.float32)
    o_ref[...] = out.astype(o_ref.dtype)


def bert_layer_norm(x, gamma, beta, *, eps=1e-12, row_tile=None):
    """x: (..., hidden); gamma, beta: (hidden,). Returns same shape/dtype as x."""
    orig_shape = x.shape
    hidden = orig_shape[-1]
    rows = 1
    for d in orig_shape[:-1]:
        rows *= d

    x2 = x.reshape(rows, hidden)
    gamma2 = gamma.reshape(1, hidden)
    beta2 = beta.reshape(1, hidden)

    kind = _device_kind()
    is_v7 = "7" in kind                      # 2 TensorCores, 64 MiB VMEM
    has_bf16_vpu = is_v7 or ("v6" in kind)   # v5e has no bf16 VPU

    itemsize = jnp.dtype(x.dtype).itemsize
    sublane = max(8, 32 // itemsize)         # 8 f32, 16 bf16, 32 int8/fp8

    # Per-row VMEM cost: double-buffered in+out tiles (native dtype) plus ~3
    # f32 upcast/epilogue temporaries inside the kernel body.
    per_row_bytes = 4 * hidden * itemsize + 3 * hidden * 4
    if is_v7:
        budget, rt_cap = 24 << 20, 1024      # stay well under 64 MiB VMEM
    else:
        budget, rt_cap = 48 << 20, 2048      # 128 MiB VMEM on v5e/v6e

    if row_tile is None:
        rt = min(rt_cap, max(1, budget // per_row_bytes))
    else:
        rt = int(row_tile)
    rt = max(sublane, (rt // sublane) * sublane)  # sublane-aligned, >= pack

    if is_v7 and rows >= 2 * sublane:
        # Keep >= ~4 grid steps so both v7x TensorCores get work.
        balanced = -(-rows // 4)
        balanced = max(sublane, ((balanced + sublane - 1) // sublane) * sublane)
        rt = min(rt, balanced)

    if rows < sublane:
        rt = rows                             # full-extent block: always legal
    else:
        rt = min(rt, (rows // sublane) * sublane)

    # No host-side padding: ragged last block is clipped/masked by Pallas.
    grid_steps = pl.cdiv(rows, rt)

    # Explicit scoped-VMEM budget incl. f32 intermediates, capped per chip.
    vmem_limit = (
        4 * rt * hidden * itemsize            # double-buffered in + out tiles
        + 3 * rt * hidden * 4                 # f32 upcast / epilogue temporaries
        + 4 * hidden * (itemsize + 4)         # gamma/beta (+ f32 copies)
        + (4 << 20)                           # slack
    )
    vmem_limit = int(min(vmem_limit, (48 << 20) if is_v7 else (96 << 20)))

    core_parallel = getattr(pltpu, "CORE_PARALLEL", None)
    if is_v7 and core_parallel is not None and grid_steps >= 2:
        semantics = (core_parallel,)          # split rows across v7x's 2 TCs
    else:
        semantics = ("parallel",)

    bf16_epilogue = bool(x.dtype == jnp.bfloat16 and has_bf16_vpu)

    out = pl.pallas_call(
        functools.partial(_layernorm_kernel, eps=eps, bf16_epilogue=bf16_epilogue),
        out_shape=jax.ShapeDtypeStruct((rows, hidden), x.dtype),
        grid_spec=pltpu.PrefetchScalarGridSpec(
            num_scalar_prefetch=0,
            grid=(grid_steps,),
            in_specs=[
                pl.BlockSpec((rt, hidden), lambda i: (i, 0)),
                pl.BlockSpec((1, hidden), lambda i: (0, 0)),
                pl.BlockSpec((1, hidden), lambda i: (0, 0)),
            ],
            out_specs=pl.BlockSpec((rt, hidden), lambda i: (i, 0)),
        ),
        compiler_params=pltpu.CompilerParams(
            dimension_semantics=semantics,
            vmem_limit_bytes=vmem_limit,
        ),
    )(x2, gamma2, beta2)

    return out.reshape(orig_shape)


if __name__ == "__main__":
    batch, seq, hidden = 2, 8, 32
    key = jax.random.PRNGKey(0)
    kx, kg, kb = jax.random.split(key, 3)

    x = jax.random.normal(kx, (batch, seq, hidden), dtype=jnp.float32)
    # Module init is gamma=ones, beta=zeros; perturb so the affine part is exercised.
    gamma = 1.0 + 0.1 * jax.random.normal(kg, (hidden,), dtype=jnp.float32)
    beta = 0.1 * jax.random.normal(kb, (hidden,), dtype=jnp.float32)

    def ref_ln(xv):
        u = jnp.mean(xv, axis=-1, keepdims=True)
        s = jnp.mean((xv - u) ** 2, axis=-1, keepdims=True)
        return gamma * ((xv - u) / jnp.sqrt(s + 1e-12)) + beta

    out = jax.block_until_ready(bert_layer_norm(x, gamma, beta))
    assert out.shape == x.shape and out.dtype == x.dtype
    assert jnp.allclose(out, ref_ln(x), atol=1e-5, rtol=1e-5), "mismatch vs reference"

    # Ragged path: rows (= 21) not a multiple of the row tile; no host-side
    # padding — Pallas masks the partial last block.
    x_odd = jax.random.normal(kx, (3, 7, hidden), dtype=jnp.float32)
    out_odd = jax.block_until_ready(bert_layer_norm(x_odd, gamma, beta))
    assert jnp.allclose(out_odd, ref_ln(x_odd), atol=1e-5, rtol=1e-5), "mismatch (ragged path)"

    print("KERNEL_OK")
</pallas_src>

<mosaic_0001>
module attributes {stable_mosaic.version = 11 : i64} {
  func.func @_layernorm_kernel(%arg0: i32, %arg1: memref<16x32xf32, #tpu.memory_space<vmem>>, %arg2: memref<1x32xf32, #tpu.memory_space<vmem>>, %arg3: memref<1x32xf32, #tpu.memory_space<vmem>>, %arg4: memref<16x32xf32, #tpu.memory_space<vmem>>) attributes {dimension_semantics = [#tpu.dimension_semantics<parallel>], iteration_bounds = array<i64: 1>, scalar_prefetch = 0 : i64, scratch_operands = 0 : i64, tpu.core_type = #tpu.core_type<tc>, window_params = [{transform_indices = @transform_0, window_bounds = array<i64: 16, 32>}, {pipeline_mode = #tpu.pipeline_mode<synchronous>, transform_indices = @transform_1, window_bounds = array<i64: 1, 32>}, {pipeline_mode = #tpu.pipeline_mode<synchronous>, transform_indices = @transform_2, window_bounds = array<i64: 1, 32>}, {transform_indices = @transform_3, window_bounds = array<i64: 16, 32>}]} {
    %c0 = arith.constant 0 : index
    %c0_0 = arith.constant 0 : index
    %0 = vector.load %arg1[%c0, %c0_0] : memref<16x32xf32, #tpu.memory_space<vmem>>, vector<16x32xf32>
    %cst = arith.constant dense<0.000000e+00> : vector<16xf32>
    %1 = vector.multi_reduction <add>, %0, %cst [1] : vector<16x32xf32> to vector<16xf32>
    %2 = vector.shape_cast %1 : vector<16xf32> to vector<16x1xf32>
    %cst_1 = arith.constant 3.200000e+01 : f32
    %3 = vector.broadcast %cst_1 : f32 to vector<16x1xf32>
    %4 = arith.divf %2, %3 : vector<16x1xf32>
    %5 = arith.mulf %0, %0 : vector<16x32xf32>
    %cst_2 = arith.constant dense<0.000000e+00> : vector<16xf32>
    %6 = vector.multi_reduction <add>, %5, %cst_2 [1] : vector<16x32xf32> to vector<16xf32>
    %7 = vector.shape_cast %6 : vector<16xf32> to vector<16x1xf32>
    %cst_3 = arith.constant 3.200000e+01 : f32
    %8 = vector.broadcast %cst_3 : f32 to vector<16x1xf32>
    %9 = arith.divf %7, %8 : vector<16x1xf32>
    %10 = arith.mulf %4, %4 : vector<16x1xf32>
    %11 = arith.subf %9, %10 : vector<16x1xf32>
    %cst_4 = arith.constant 0.000000e+00 : f32
    %12 = vector.broadcast %cst_4 : f32 to vector<16x1xf32>
    %13 = arith.maximumf %11, %12 : vector<16x1xf32>
    %cst_5 = arith.constant 9.99999996E-13 : f32
    %14 = vector.broadcast %cst_5 : f32 to vector<16x1xf32>
    %15 = arith.addf %13, %14 : vector<16x1xf32>
    %16 = math.rsqrt %15 : vector<16x1xf32>
    %c0_6 = arith.constant 0 : index
    %c0_7 = arith.constant 0 : index
    %17 = vector.load %arg2[%c0_6, %c0_7] : memref<1x32xf32, #tpu.memory_space<vmem>>, vector<1x32xf32>
    %18 = vector.broadcast %16 : vector<16x1xf32> to vector<16x32xf32>
    %19 = vector.broadcast %17 : vector<1x32xf32> to vector<16x32xf32>
    %20 = arith.mulf %18, %19 : vector<16x32xf32>
    %21 = vector.broadcast %4 : vector<16x1xf32> to vector<16x32xf32>
    %22 = arith.subf %0, %21 : vector<16x32xf32>
    %23 = arith.mulf %22, %20 : vector<16x32xf32>
    %c0_8 = arith.constant 0 : index
    %c0_9 = arith.constant 0 : index
    %24 = vector.load %arg3[%c0_8, %c0_9] : memref<1x32xf32, #tpu.memory_space<vmem>>, vector<1x32xf32>
    %25 = vector.broadcast %24 : vector<1x32xf32> to vector<16x32xf32>
    %26 = arith.addf %23, %25 : vector<16x32xf32>
    %c0_10 = arith.constant 0 : index
    %c0_11 = arith.constant 0 : index
    %27 = vector.load %arg4[%c0_10, %c0_11] : memref<16x32xf32, #tpu.memory_space<vmem>>, vector<16x32xf32>
    tpu.vector_store %arg4[%c0_10, %c0_11], %26 {strides = array<i32>} : memref<16x32xf32, #tpu.memory_space<vmem>>, vector<16x32xf32>,
    return
  }
  func.func @transform_0(%arg0: i32) -> (i32, i32) {
    %c0_i32 = arith.constant 0 : i32
    %c0_i32_0 = arith.constant 0 : i32
    return %arg0, %c0_i32 : i32, i32
  }
  func.func @transform_1(%arg0: i32) -> (i32, i32) {
    %c0_i32 = arith.constant 0 : i32
    %c0_i32_0 = arith.constant 0 : i32
    %c0_i32_1 = arith.constant 0 : i32
    return %c0_i32, %c0_i32_0 : i32, i32
  }
  func.func @transform_2(%arg0: i32) -> (i32, i32) {
    %c0_i32 = arith.constant 0 : i32
    %c0_i32_0 = arith.constant 0 : i32
    %c0_i32_1 = arith.constant 0 : i32
    return %c0_i32, %c0_i32_0 : i32, i32
  }
  func.func @transform_3(%arg0: i32) -> (i32, i32) {
    %c0_i32 = arith.constant 0 : i32
    %c0_i32_0 = arith.constant 0 : i32
    return %arg0, %c0_i32 : i32, i32
  }
}

</mosaic_0001>

<llo_original>
// kernel: tpu_custom_call.1
$region0: #{tpu_custom_call.1}
  #allocation0 [shape = 'u32[]', space=smem, size = 0x4, offset = 0x4, fixed_abs, tag = 'smem constant byte address 0x4 - core index']
  #allocation1 [shape = 'u32[144,128]{1,0:T(1,128)}', space=vmem, size = 0x12000, scoped, tag = 'internal scratch']
  %s0 = inlined_call_operand.hbm [shape: f32[16,32], index: 0, kind: input, shape index: {}]
  %s1 = inlined_call_operand.vmem [shape: f32[1,32], index: 1, kind: input, shape index: {}]
  %s2 = inlined_call_operand.vmem [shape: f32[1,32], index: 2, kind: input, shape index: {}]
  %s3 = inlined_call_operand.hbm [shape: f32[16,32], index: 3, kind: output, shape index: {}]
  %s4 = sld [smem:[#allocation0]]
  $region26: #{tpu_custom_call.1} parent=0
    _
  %s6 = ssub.s32 1, %s4
  %s7 = scalar_select 0, %s6, %s4
  $region1: #{tpu_custom_call.1} parent=0
    #allocation2 [shape = 'u8[8192]{0}', space=vmem, size = 0x2000, scoped, tag = 'input window, operand 0, single buffered']
    #allocation3 [shape = 's32[1]{0}', space=sflag, size = 0x4, scoped, tag = 'scoped memory for tpu_custom_call.1']
    #allocation4 [shape = 's32[1]{0}', space=sflag, size = 0x4, scoped, tag = 'scoped memory for tpu_custom_call.1']
    #allocation5 [shape = 'u8[8192]{0}', space=vmem, size = 0x2000, scoped, tag = 'output window, operand 0, single buffered']
    %8 = vsyncpa [#allocation3], 0
    %9 = vsyncpa [#allocation4], 0
    // Predicated region
    $region2: #{tpu_custom_call.1} parent=1 // pred_check
      _
    $region3: #{tpu_custom_call.1} parent=1 // pred_check_branch
      %11 = sbr.rel (0) target = $region5
    $region4: #{tpu_custom_call.1} parent=1 // pred_region
      %s13 = ssub.s32 256, 256
      %14 = vsyncadd [#allocation3], %s13
      %s15 = sshll.u32 [#allocation2], 4
      %s16 = int_to_ptr.vmem [resolvable:$true] %s15
      %21 = dma.hbm_to_vmem [thread:$0]  %s0, 256, %s16, [#allocation3], 128, 128, 8
    $region5: #{tpu_custom_call.1} parent=1 // pred_fallthru
      _
    // Predicated region
    $region6: #{tpu_custom_call.1} parent=1 // pred_check
      _
    $region7: #{tpu_custom_call.1} parent=1 // pred_check_branch
      %23 = sbr.rel (0) target = $region9
    $region8: #{tpu_custom_call.1} parent=1 // pred_region
      _
    $region9: #{tpu_custom_call.1} parent=1 // pred_fallthru
      _
    // Predicated region
    $region10: #{tpu_custom_call.1} parent=1 // pred_check
      _
    $region11: #{tpu_custom_call.1} parent=1 // pred_check_branch
      %25 = sbr.rel (0) target = $region13
    $region12: #{tpu_custom_call.1} parent=1 // pred_region
      _
    $region13: #{tpu_custom_call.1} parent=1 // pred_fallthru
      _
    // Predicated region
    $region14: #{tpu_custom_call.1} parent=1 // pred_check
      _
    $region15: #{tpu_custom_call.1} parent=1 // pred_check_branch
      %27 = sbr.rel (0) target = $region17
    $region16: #{tpu_custom_call.1} parent=1 // pred_region
      %28 = dma.done [#allocation3], 256
    $region17: #{tpu_custom_call.1} parent=1 // pred_fallthru
      _
    %v29 = vld [vmem:[#allocation2] sm:$0xff]
    %v30 = vld [vmem:[#allocation2 + $0x8] sm:$0xff]
    %vm31 = vcmask 261120
    %v32 = vsel %vm31, %v29, 0.0
    %33 = vadd.xlane.f32.xlu0 %v32
    %v34 = vpop.xlane.xlu0 %33
    %v35 = vsel %vm31, %v30, 0.0
    %36 = vadd.xlane.f32.xlu0 %v35
    %v37 = vpop.xlane.xlu0 %36
    %v38 = vrcp.pop 32.0
    %v39 = vmul.f32 %v34, %v38
    %v40 = vmul.f32 %v37, %v38
    %v41 = vmul.f32 %v29, %v29
    %v42 = vmul.f32 %v30, %v30
    %v43 = vsel %vm31, %v41, 0.0
    %44 = vadd.xlane.f32.xlu0 %v43
    %v45 = vpop.xlane.xlu0 %44
    %v46 = vsel %vm31, %v42, 0.0
    %47 = vadd.xlane.f32.xlu0 %v46
    %v48 = vpop.xlane.xlu0 %47
    %v49 = vmul.f32 %v45, %v38
    %v50 = vmul.f32 %v48, %v38
    %v51 = vmul.f32 %v39, %v39
    %v52 = vmul.f32 %v40, %v40
    %v53 = vsub.f32 %v49, %v51
    %v54 = vsub.f32 %v50, %v52
    %v55 = vmax.f32 %v53, 0.0
    %v56 = vmax.f32 %v54, 0.0
    %v57 = vadd.f32 %v55, 1e-12
    %v58 = vadd.f32 %v56, 1e-12
    %v59 = vrsqrt.pop %v57
    %v60 = vrsqrt.pop %v58
    %v61 = vld [vmem:[%s1] sm:$0x1]
    %v63 = vlaneseq
    %v64 = vshrl.u32 %v63, 7
    %v65 = vsub.s32 0, %v64
    %v66 = vrot.slane %v61, %v65
    %v68 = vmul.f32 %v59, %v66
    %v69 = vmul.f32 %v60, %v66
    %v70 = vsub.f32 %v29, %v39
    %v71 = vsub.f32 %v30, %v40
    %v72 = vmul.f32 %v70, %v68
    %v73 = vmul.f32 %v71, %v69
    %v74 = vld [vmem:[%s2] sm:$0x1]
    %v76 = vlaneseq
    %v77 = vshrl.u32 %v76, 7
    %v78 = vsub.s32 0, %v77
    %v79 = vrot.slane %v74, %v78
    %v81 = vadd.f32 %v72, %v79
    %v82 = vadd.f32 %v73, %v79
    %83 = vst.msk [vmem:[#allocation5] sm:$0xff] %vm31, %v81
    %84 = vst.msk [vmem:[#allocation5 + $0x8] sm:$0xff] %vm31, %v82
    // Predicated region
    $region18: #{tpu_custom_call.1} parent=1 // pred_check
      _
    $region19: #{tpu_custom_call.1} parent=1 // pred_check_branch
      %86 = sbr.rel (0) target = $region21
    $region20: #{tpu_custom_call.1} parent=1 // pred_region
      %s88 = ssub.s32 256, 256
      %89 = vsyncadd [#allocation4], %s88
      %s90 = sshll.u32 [#allocation5], 4
      %s91 = int_to_ptr.vmem [resolvable:$true] %s90
      %96 = dma.vmem_to_hbm [thread:$0]  %s91, 256, %s3, [#allocation4], 128, 128, 8
    $region21: #{tpu_custom_call.1} parent=1 // pred_fallthru
      _
    // Predicated region
    $region22: #{tpu_custom_call.1} parent=1 // pred_check
      _
    $region23: #{tpu_custom_call.1} parent=1 // pred_check_branch
      %98 = sbr.rel (0) target = $region25
    $region24: #{tpu_custom_call.1} parent=1 // pred_region
      %99 = dma.done [#allocation4], 256
    $region25: #{tpu_custom_call.1} parent=1 // pred_fallthru
      _
    %100 = vsyncpa [#allocation3], 1
    %101 = vsyncpa [#allocation4], 1

</llo_original>
